<compile_context>
chip_gen: v7x
topology: tpu7x:2x2x1
jax: 0.10.0
libtpu: 0.0.40
codegen_flags: <defaults>
</compile_context>

<pallas_src>
import jax
import jax.numpy as jnp
from jax.experimental import pallas as pl
from jax.experimental.pallas import tpu as pltpu

BN_EPS = 1e-5  # PyTorch BatchNorm1d default eps


def _round_up(x, m):
    return ((x + m - 1) // m) * m


def _pad2(x, rows, cols):
    return jnp.pad(x, ((0, rows - x.shape[0]), (0, cols - x.shape[1])))


# ---------------------------------------------------------------------------
# Fused forward kernel: all layers + pooling + prediction in one call.
# ---------------------------------------------------------------------------
def _make_fused_kernel(n_conv):
    n_pred = n_conv + 1

    def kernel(*refs):
        a_ref, h0_ref, maskw_ref = refs[0], refs[1], refs[2]
        conv_refs = refs[3:3 + 4 * n_conv]                      # (W, b, gamma, beta) per layer
        pred_refs = refs[3 + 4 * n_conv:3 + 4 * n_conv + 2 * n_pred]  # (W_t, b) per layer
        scores_ref, pooled_ref = refs[-2], refs[-1]

        a_bf = a_ref[...]                             # bf16 MXU operand (staged by wrapper)
        maskw = maskw_ref[...]                        # [N,1]: 1/n_nodes for real rows, 0 for pad
        mask = (maskw > 0.0).astype(jnp.float32)      # [N,1]: row validity

        h = h0_ref[...]                               # f32, VMEM-resident across layers
        scores = jnp.zeros(scores_ref.shape, jnp.float32)

        for i in range(n_pred):
            # Mean graph pooling over real nodes (padded rows of h are zero).
            pooled = jnp.sum(h * maskw, axis=0, keepdims=True)          # [1, FP]
            pooled_ref[pl.ds(i, 1), :] = pooled
            wt = pred_refs[2 * i][...]
            pb = pred_refs[2 * i + 1][...]
            scores = scores + jnp.dot(pooled, wt,
                                      preferred_element_type=jnp.float32) + pb

            if i < n_conv:
                w_ref, b_ref, g_ref, be_ref = conv_refs[4 * i:4 * i + 4]
                # GraphConv: project first, then aggregate  A_hat @ (H @ W) + b
                hw = jnp.dot(h.astype(jnp.bfloat16), w_ref[...],
                             preferred_element_type=jnp.float32)
                z = jnp.dot(a_bf, hw.astype(jnp.bfloat16),
                            preferred_element_type=jnp.float32) + b_ref[...]
                # BatchNorm1d (training-mode batch stats over real nodes),
                # single masked sweep for E[z], E[z^2]; fold into scale/shift.
                mean = jnp.sum(z * maskw, axis=0, keepdims=True)
                ex2 = jnp.sum(z * z * maskw, axis=0, keepdims=True)
                var = jnp.maximum(ex2 - mean * mean, 0.0)
                scale = g_ref[...] * jax.lax.rsqrt(var + BN_EPS)
                shift = be_ref[...] - mean * scale
                # affine + ReLU, then re-zero padded rows.
                h = jnp.maximum(z * scale + shift, 0.0) * mask

        scores_ref[...] = scores

    return kernel


@jax.jit
def gcn_forward(a_hat, features, params):
    # Mirrors GCN.forward with linear_pooling_type='sum',
    # graph_pooling_type='mean', dropout=0 (so self.dropout is None).
    n_nodes, in_feats = features.shape
    n_conv = len(params["conv"])
    n_pred = len(params["pred"])
    n_hidden = params["conv"][0][0].shape[1] if n_conv else in_feats
    n_classes = params["pred"][0][0].shape[1]

    NP = _round_up(n_nodes, 16)                      # sublane-aligned (bf16-packed) node count
    FP = _round_up(max(in_feats, n_hidden), 128)     # common lane-dense feature width
    CP = _round_up(n_classes, 128)                   # lane-dense class width

    a_pad = _pad2(a_hat.astype(jnp.bfloat16), NP, NP)          # bf16 MXU operand
    h0_pad = _pad2(features.astype(jnp.float32), NP, FP)
    # mask / n_nodes in one array: masked-sum == mean over real nodes.
    maskw = ((jnp.arange(NP) < n_nodes).astype(jnp.float32) / n_nodes)[:, None]

    inputs = [a_pad, h0_pad, maskw]
    for (w, b), (gamma, beta) in zip(params["conv"], params["bn"]):
        inputs += [_pad2(w.astype(jnp.bfloat16), FP, FP),       # bf16 weights
                   _pad2(b, 1, FP), _pad2(gamma, 1, FP), _pad2(beta, 1, FP)]
    for (w_t, pb) in params["pred"]:
        # zero-padded rows of W_t => padded feature columns never leak.
        inputs += [_pad2(w_t, FP, CP), _pad2(pb, 1, CP)]

    full = lambda arr: pl.BlockSpec(arr.shape, lambda i: (0, 0))
    in_specs = [full(x) for x in inputs]
    out_specs = [pl.BlockSpec((1, CP), lambda i: (0, 0)),
                 pl.BlockSpec((n_pred, FP), lambda i: (0, 0))]

    # Size scoped VMEM to the actual footprint (double-buffer + scratch headroom).
    vmem_bytes = sum(int(x.size) * x.dtype.itemsize for x in inputs)
    vmem_bytes += (CP + n_pred * FP) * 4
    vmem_bytes = min(max(4 * 1024 * 1024, 4 * vmem_bytes), 64 * 1024 * 1024)

    scores_pad, pooled_pad = pl.pallas_call(
        _make_fused_kernel(n_conv),
        grid=(1,),
        in_specs=in_specs,
        out_specs=out_specs,
        out_shape=(jax.ShapeDtypeStruct((1, CP), jnp.float32),
                   jax.ShapeDtypeStruct((n_pred, FP), jnp.float32)),
        compiler_params=pltpu.CompilerParams(
            dimension_semantics=("arbitrary",),
            vmem_limit_bytes=int(vmem_bytes)),
    )(*inputs)

    scores = scores_pad[:, :n_classes]
    pool_dims = [wt.shape[0] for (wt, _) in params["pred"]]
    pls = [pooled_pad[i:i + 1, :d] for i, d in enumerate(pool_dims)]
    return scores, pls


# ---------------------------------------------------------------------------
# Parameter setup / graph construction / pure-JAX reference (for checking).
# ---------------------------------------------------------------------------
def init_params(key, in_feats, n_hidden, n_classes, n_layers):
    params = {"conv": [], "bn": [], "pred": []}
    dims = [in_feats] + [n_hidden] * (n_layers - 1)
    for l in range(n_layers - 1):  # GCN builds n_layers - 1 GraphConv layers
        key, kw = jax.random.split(key)
        fan_in, fan_out = dims[l], dims[l + 1]
        scale = jnp.sqrt(2.0 / (fan_in + fan_out))
        w = scale * jax.random.normal(kw, (fan_in, fan_out), jnp.float32)
        b = jnp.zeros((1, fan_out), jnp.float32)
        params["conv"].append((w, b))
        gamma = jnp.ones((1, fan_out), jnp.float32)  # BatchNorm1d defaults
        beta = jnp.zeros((1, fan_out), jnp.float32)
        params["bn"].append((gamma, beta))
    # linears_prediction: one per hidden (including the raw features at i == 0)
    pred_in_dims = [in_feats] + [n_hidden] * (n_layers - 1)
    for d in pred_in_dims:
        key, kw, kb = jax.random.split(key, 3)
        scale = 1.0 / jnp.sqrt(jnp.float32(d))
        w_t = scale * jax.random.normal(kw, (d, n_classes), jnp.float32)  # [F, C]
        b = scale * jax.random.normal(kb, (1, n_classes), jnp.float32)
        params["pred"].append((w_t, b))
    return params


def build_normalized_adjacency(key, n_nodes):
    # Deterministic random undirected graph, DGL-style symmetric normalization.
    a = jax.random.bernoulli(key, 0.3, (n_nodes, n_nodes)).astype(jnp.float32)
    a = jnp.maximum(a, a.T)
    a = a * (1.0 - jnp.eye(n_nodes, dtype=jnp.float32))  # no self loops
    deg = jnp.sum(a, axis=1)
    norm = jnp.where(deg > 0, 1.0 / jnp.sqrt(deg), 0.0)  # DGL: inf -> 0
    return norm[:, None] * a * norm[None, :]


def gcn_reference(a_hat, features, params):
    # Plain-JAX reference mirroring the kernel math (same bf16 MXU operands).
    a_bf = a_hat.astype(jnp.bfloat16)
    h = features
    hiddens = [h]
    for (w, b), (gamma, beta) in zip(params["conv"], params["bn"]):
        hw = jnp.dot(h.astype(jnp.bfloat16), w.astype(jnp.bfloat16),
                     preferred_element_type=jnp.float32)
        z = jnp.dot(a_bf, hw.astype(jnp.bfloat16),
                    preferred_element_type=jnp.float32) + b
        mean = jnp.mean(z, axis=0, keepdims=True)
        var = jnp.mean((z - mean) ** 2, axis=0, keepdims=True)
        zn = (z - mean) * jax.lax.rsqrt(var + BN_EPS)
        h = jnp.maximum(zn * gamma + beta, 0.0)
        hiddens.append(h)
    scores = jnp.zeros((1, params["pred"][0][0].shape[1]), jnp.float32)
    pls = []
    for h_i, (w_t, pb) in zip(hiddens, params["pred"]):
        pooled = jnp.mean(h_i, axis=0, keepdims=True)
        scores = scores + jnp.dot(pooled, w_t,
                                  preferred_element_type=jnp.float32) + pb
        pls.append(pooled)
    return scores, pls


if __name__ == "__main__":
    N_NODES, IN_FEATS, N_HIDDEN, N_CLASSES, N_LAYERS = 32, 16, 32, 4, 3
    # TODO(synk): nn.Dropout is stochastic at train time; dropout=0 is used here
    # (module then sets self.dropout = None), matching the deterministic config.

    key = jax.random.PRNGKey(0)
    k_adj, k_feat, k_params = jax.random.split(key, 3)

    a_hat = build_normalized_adjacency(k_adj, N_NODES)
    features = jax.random.normal(k_feat, (N_NODES, IN_FEATS), jnp.float32)
    params = init_params(k_params, IN_FEATS, N_HIDDEN, N_CLASSES, N_LAYERS)

    scores, pls = gcn_forward(a_hat, features, params)
    jax.block_until_ready(scores)
    for p in pls:
        jax.block_until_ready(p)

    assert scores.shape == (1, N_CLASSES)
    assert len(pls) == N_LAYERS
    assert pls[0].shape == (1, IN_FEATS) and pls[-1].shape == (1, N_HIDDEN)

    ref_scores, ref_pls = gcn_reference(a_hat, features, params)
    assert jnp.allclose(scores, ref_scores, atol=1e-2, rtol=1e-2)
    for p, rp in zip(pls, ref_pls):
        assert jnp.allclose(p, rp, atol=1e-2, rtol=1e-2)

    print("KERNEL_OK")
</pallas_src>

<mosaic_0001>
module attributes {stable_mosaic.version = 11 : i64} {
  func.func @kernel(%arg0: i32, %arg1: memref<32x32xbf16, #tpu.memory_space<vmem>>, %arg2: memref<32x128xf32, #tpu.memory_space<vmem>>, %arg3: memref<32x1xf32, #tpu.memory_space<vmem>>, %arg4: memref<128x128xbf16, #tpu.memory_space<vmem>>, %arg5: memref<1x128xf32, #tpu.memory_space<vmem>>, %arg6: memref<1x128xf32, #tpu.memory_space<vmem>>, %arg7: memref<1x128xf32, #tpu.memory_space<vmem>>, %arg8: memref<128x128xbf16, #tpu.memory_space<vmem>>, %arg9: memref<1x128xf32, #tpu.memory_space<vmem>>, %arg10: memref<1x128xf32, #tpu.memory_space<vmem>>, %arg11: memref<1x128xf32, #tpu.memory_space<vmem>>, %arg12: memref<128x128xf32, #tpu.memory_space<vmem>>, %arg13: memref<1x128xf32, #tpu.memory_space<vmem>>, %arg14: memref<128x128xf32, #tpu.memory_space<vmem>>, %arg15: memref<1x128xf32, #tpu.memory_space<vmem>>, %arg16: memref<128x128xf32, #tpu.memory_space<vmem>>, %arg17: memref<1x128xf32, #tpu.memory_space<vmem>>, %arg18: memref<1x128xf32, #tpu.memory_space<vmem>>, %arg19: memref<3x128xf32, #tpu.memory_space<vmem>>) attributes {dimension_semantics = [#tpu.dimension_semantics<arbitrary>], iteration_bounds = array<i64: 1>, scalar_prefetch = 0 : i64, scratch_operands = 0 : i64, tpu.core_type = #tpu.core_type<tc>, window_params = [{pipeline_mode = #tpu.pipeline_mode<synchronous>, transform_indices = @transform_0, window_bounds = array<i64: 32, 32>}, {pipeline_mode = #tpu.pipeline_mode<synchronous>, transform_indices = @transform_1, window_bounds = array<i64: 32, 128>}, {pipeline_mode = #tpu.pipeline_mode<synchronous>, transform_indices = @transform_2, window_bounds = array<i64: 32, 1>}, {pipeline_mode = #tpu.pipeline_mode<synchronous>, transform_indices = @transform_3, window_bounds = array<i64: 128, 128>}, {pipeline_mode = #tpu.pipeline_mode<synchronous>, transform_indices = @transform_4, window_bounds = array<i64: 1, 128>}, {pipeline_mode = #tpu.pipeline_mode<synchronous>, transform_indices = @transform_5, window_bounds = array<i64: 1, 128>}, {pipeline_mode = #tpu.pipeline_mode<synchronous>, transform_indices = @transform_6, window_bounds = array<i64: 1, 128>}, {pipeline_mode = #tpu.pipeline_mode<synchronous>, transform_indices = @transform_7, window_bounds = array<i64: 128, 128>}, {pipeline_mode = #tpu.pipeline_mode<synchronous>, transform_indices = @transform_8, window_bounds = array<i64: 1, 128>}, {pipeline_mode = #tpu.pipeline_mode<synchronous>, transform_indices = @transform_9, window_bounds = array<i64: 1, 128>}, {pipeline_mode = #tpu.pipeline_mode<synchronous>, transform_indices = @transform_10, window_bounds = array<i64: 1, 128>}, {pipeline_mode = #tpu.pipeline_mode<synchronous>, transform_indices = @transform_11, window_bounds = array<i64: 128, 128>}, {pipeline_mode = #tpu.pipeline_mode<synchronous>, transform_indices = @transform_12, window_bounds = array<i64: 1, 128>}, {pipeline_mode = #tpu.pipeline_mode<synchronous>, transform_indices = @transform_13, window_bounds = array<i64: 128, 128>}, {pipeline_mode = #tpu.pipeline_mode<synchronous>, transform_indices = @transform_14, window_bounds = array<i64: 1, 128>}, {pipeline_mode = #tpu.pipeline_mode<synchronous>, transform_indices = @transform_15, window_bounds = array<i64: 128, 128>}, {pipeline_mode = #tpu.pipeline_mode<synchronous>, transform_indices = @transform_16, window_bounds = array<i64: 1, 128>}, {pipeline_mode = #tpu.pipeline_mode<synchronous>, transform_indices = @transform_17, window_bounds = array<i64: 1, 128>}, {pipeline_mode = #tpu.pipeline_mode<synchronous>, transform_indices = @transform_18, window_bounds = array<i64: 3, 128>}]} {
    %c0 = arith.constant 0 : index
    %c0_0 = arith.constant 0 : index
    %0 = vector.load %arg1[%c0, %c0_0] : memref<32x32xbf16, #tpu.memory_space<vmem>>, vector<32x32xbf16>
    %c0_1 = arith.constant 0 : index
    %c0_2 = arith.constant 0 : index
    %1 = vector.load %arg3[%c0_1, %c0_2] : memref<32x1xf32, #tpu.memory_space<vmem>>, vector<32x1xf32>
    %cst = arith.constant 0.000000e+00 : f32
    %2 = vector.broadcast %cst : f32 to vector<32x1xf32>
    %3 = arith.cmpf ogt, %1, %2 : vector<32x1xf32>
    %4 = arith.extui %3 : vector<32x1xi1> to vector<32x1xi32>
    %5 = arith.sitofp %4 : vector<32x1xi32> to vector<32x1xf32>
    %c0_3 = arith.constant 0 : index
    %c0_4 = arith.constant 0 : index
    %6 = vector.load %arg2[%c0_3, %c0_4] : memref<32x128xf32, #tpu.memory_space<vmem>>, vector<32x128xf32>
    %cst_5 = arith.constant 0.000000e+00 : f32
    %7 = vector.broadcast %cst_5 : f32 to vector<1x128xf32>
    %8 = vector.broadcast %1 : vector<32x1xf32> to vector<32x128xf32>
    %9 = arith.mulf %6, %8 : vector<32x128xf32>
    %cst_6 = arith.constant dense<0.000000e+00> : vector<128xf32>
    %10 = vector.multi_reduction <add>, %9, %cst_6 [0] : vector<32x128xf32> to vector<128xf32>
    %11 = vector.shape_cast %10 : vector<128xf32> to vector<1x128xf32>
    %c0_7 = arith.constant 0 : index
    %c0_8 = arith.constant 0 : index
    %12 = vector.load %arg19[%c0_7, %c0_8] : memref<3x128xf32, #tpu.memory_space<vmem>>, vector<1x128xf32>
    tpu.vector_store %arg19[%c0_7, %c0_8], %11 {strides = array<i32>} : memref<3x128xf32, #tpu.memory_space<vmem>>, vector<1x128xf32>,
    %c0_9 = arith.constant 0 : index
    %c0_10 = arith.constant 0 : index
    %13 = vector.load %arg12[%c0_9, %c0_10] : memref<128x128xf32, #tpu.memory_space<vmem>>, vector<128x128xf32>
    %c0_11 = arith.constant 0 : index
    %c0_12 = arith.constant 0 : index
    %14 = vector.load %arg13[%c0_11, %c0_12] : memref<1x128xf32, #tpu.memory_space<vmem>>, vector<1x128xf32>
    %cst_13 = arith.constant dense<0.000000e+00> : vector<1x128xf32>
    %15 = tpu.matmul %11, %13, %cst_13 {dimension_numbers = #tpu.dot_dimension_numbers<[1], [0], [0], [1], [0, 0, 1, 1], [], []>} : vector<1x128xf32>, vector<128x128xf32>, vector<1x128xf32> -> vector<1x128xf32>
    %16 = arith.addf %7, %15 : vector<1x128xf32>
    %17 = arith.addf %16, %14 : vector<1x128xf32>
    %18 = arith.truncf %6 : vector<32x128xf32> to vector<32x128xbf16>
    %c0_14 = arith.constant 0 : index
    %c0_15 = arith.constant 0 : index
    %19 = vector.load %arg4[%c0_14, %c0_15] : memref<128x128xbf16, #tpu.memory_space<vmem>>, vector<128x128xbf16>
    %cst_16 = arith.constant dense<0.000000e+00> : vector<32x128xf32>
    %20 = tpu.matmul %18, %19, %cst_16 {dimension_numbers = #tpu.dot_dimension_numbers<[1], [0], [0], [1], [0, 0, 1, 1], [], []>} : vector<32x128xbf16>, vector<128x128xbf16>, vector<32x128xf32> -> vector<32x128xf32>
    %21 = arith.truncf %20 : vector<32x128xf32> to vector<32x128xbf16>
    %cst_17 = arith.constant dense<0.000000e+00> : vector<32x128xf32>
    %22 = tpu.matmul %0, %21, %cst_17 {dimension_numbers = #tpu.dot_dimension_numbers<[1], [0], [0], [1], [0, 0, 1, 1], [], []>} : vector<32x32xbf16>, vector<32x128xbf16>, vector<32x128xf32> -> vector<32x128xf32>
    %c0_18 = arith.constant 0 : index
    %c0_19 = arith.constant 0 : index
    %23 = vector.load %arg5[%c0_18, %c0_19] : memref<1x128xf32, #tpu.memory_space<vmem>>, vector<1x128xf32>
    %24 = vector.broadcast %23 : vector<1x128xf32> to vector<32x128xf32>
    %25 = arith.addf %22, %24 : vector<32x128xf32>
    %26 = vector.broadcast %1 : vector<32x1xf32> to vector<32x128xf32>
    %27 = arith.mulf %25, %26 : vector<32x128xf32>
    %cst_20 = arith.constant dense<0.000000e+00> : vector<128xf32>
    %28 = vector.multi_reduction <add>, %27, %cst_20 [0] : vector<32x128xf32> to vector<128xf32>
    %29 = vector.shape_cast %28 : vector<128xf32> to vector<1x128xf32>
    %30 = arith.mulf %25, %25 : vector<32x128xf32>
    %31 = vector.broadcast %1 : vector<32x1xf32> to vector<32x128xf32>
    %32 = arith.mulf %30, %31 : vector<32x128xf32>
    %cst_21 = arith.constant dense<0.000000e+00> : vector<128xf32>
    %33 = vector.multi_reduction <add>, %32, %cst_21 [0] : vector<32x128xf32> to vector<128xf32>
    %34 = vector.shape_cast %33 : vector<128xf32> to vector<1x128xf32>
    %35 = arith.mulf %29, %29 : vector<1x128xf32>
    %36 = arith.subf %34, %35 : vector<1x128xf32>
    %cst_22 = arith.constant 0.000000e+00 : f32
    %37 = vector.broadcast %cst_22 : f32 to vector<1x128xf32>
    %38 = arith.maximumf %36, %37 : vector<1x128xf32>
    %c0_23 = arith.constant 0 : index
    %c0_24 = arith.constant 0 : index
    %39 = vector.load %arg6[%c0_23, %c0_24] : memref<1x128xf32, #tpu.memory_space<vmem>>, vector<1x128xf32>
    %cst_25 = arith.constant 9.99999974E-6 : f32
    %40 = vector.broadcast %cst_25 : f32 to vector<1x128xf32>
    %41 = arith.addf %38, %40 : vector<1x128xf32>
    %42 = math.rsqrt %41 : vector<1x128xf32>
    %43 = arith.mulf %39, %42 : vector<1x128xf32>
    %c0_26 = arith.constant 0 : index
    %c0_27 = arith.constant 0 : index
    %44 = vector.load %arg7[%c0_26, %c0_27] : memref<1x128xf32, #tpu.memory_space<vmem>>, vector<1x128xf32>
    %45 = arith.mulf %29, %43 : vector<1x128xf32>
    %46 = arith.subf %44, %45 : vector<1x128xf32>
    %47 = vector.broadcast %43 : vector<1x128xf32> to vector<32x128xf32>
    %48 = arith.mulf %25, %47 : vector<32x128xf32>
    %49 = vector.broadcast %46 : vector<1x128xf32> to vector<32x128xf32>
    %50 = arith.addf %48, %49 : vector<32x128xf32>
    %cst_28 = arith.constant 0.000000e+00 : f32
    %51 = vector.broadcast %cst_28 : f32 to vector<32x128xf32>
    %52 = arith.maximumf %50, %51 : vector<32x128xf32>
    %53 = vector.broadcast %5 : vector<32x1xf32> to vector<32x128xf32>
    %54 = arith.mulf %52, %53 : vector<32x128xf32>
    %55 = vector.broadcast %1 : vector<32x1xf32> to vector<32x128xf32>
    %56 = arith.mulf %54, %55 : vector<32x128xf32>
    %cst_29 = arith.constant dense<0.000000e+00> : vector<128xf32>
    %57 = vector.multi_reduction <add>, %56, %cst_29 [0] : vector<32x128xf32> to vector<128xf32>
    %58 = vector.shape_cast %57 : vector<128xf32> to vector<1x128xf32>
    %c1 = arith.constant 1 : index
    %c0_30 = arith.constant 0 : index
    %59 = vector.load %arg19[%c1, %c0_30] : memref<3x128xf32, #tpu.memory_space<vmem>>, vector<1x128xf32>
    tpu.vector_store %arg19[%c1, %c0_30], %58 {strides = array<i32>} : memref<3x128xf32, #tpu.memory_space<vmem>>, vector<1x128xf32>,
    %c0_31 = arith.constant 0 : index
    %c0_32 = arith.constant 0 : index
    %60 = vector.load %arg14[%c0_31, %c0_32] : memref<128x128xf32, #tpu.memory_space<vmem>>, vector<128x128xf32>
    %c0_33 = arith.constant 0 : index
    %c0_34 = arith.constant 0 : index
    %61 = vector.load %arg15[%c0_33, %c0_34] : memref<1x128xf32, #tpu.memory_space<vmem>>, vector<1x128xf32>
    %cst_35 = arith.constant dense<0.000000e+00> : vector<1x128xf32>
    %62 = tpu.matmul %58, %60, %cst_35 {dimension_numbers = #tpu.dot_dimension_numbers<[1], [0], [0], [1], [0, 0, 1, 1], [], []>} : vector<1x128xf32>, vector<128x128xf32>, vector<1x128xf32> -> vector<1x128xf32>
    %63 = arith.addf %17, %62 : vector<1x128xf32>
    %64 = arith.addf %63, %61 : vector<1x128xf32>
    %65 = arith.truncf %54 : vector<32x128xf32> to vector<32x128xbf16>
    %c0_36 = arith.constant 0 : index
    %c0_37 = arith.constant 0 : index
    %66 = vector.load %arg8[%c0_36, %c0_37] : memref<128x128xbf16, #tpu.memory_space<vmem>>, vector<128x128xbf16>
    %cst_38 = arith.constant dense<0.000000e+00> : vector<32x128xf32>
    %67 = tpu.matmul %65, %66, %cst_38 {dimension_numbers = #tpu.dot_dimension_numbers<[1], [0], [0], [1], [0, 0, 1, 1], [], []>} : vector<32x128xbf16>, vector<128x128xbf16>, vector<32x128xf32> -> vector<32x128xf32>
    %68 = arith.truncf %67 : vector<32x128xf32> to vector<32x128xbf16>
    %cst_39 = arith.constant dense<0.000000e+00> : vector<32x128xf32>
    %69 = tpu.matmul %0, %68, %cst_39 {dimension_numbers = #tpu.dot_dimension_numbers<[1], [0], [0], [1], [0, 0, 1, 1], [], []>} : vector<32x32xbf16>, vector<32x128xbf16>, vector<32x128xf32> -> vector<32x128xf32>
    %c0_40 = arith.constant 0 : index
    %c0_41 = arith.constant 0 : index
    %70 = vector.load %arg9[%c0_40, %c0_41] : memref<1x128xf32, #tpu.memory_space<vmem>>, vector<1x128xf32>
    %71 = vector.broadcast %70 : vector<1x128xf32> to vector<32x128xf32>
    %72 = arith.addf %69, %71 : vector<32x128xf32>
    %73 = vector.broadcast %1 : vector<32x1xf32> to vector<32x128xf32>
    %74 = arith.mulf %72, %73 : vector<32x128xf32>
    %cst_42 = arith.constant dense<0.000000e+00> : vector<128xf32>
    %75 = vector.multi_reduction <add>, %74, %cst_42 [0] : vector<32x128xf32> to vector<128xf32>
    %76 = vector.shape_cast %75 : vector<128xf32> to vector<1x128xf32>
    %77 = arith.mulf %72, %72 : vector<32x128xf32>
    %78 = vector.broadcast %1 : vector<32x1xf32> to vector<32x128xf32>
    %79 = arith.mulf %77, %78 : vector<32x128xf32>
    %cst_43 = arith.constant dense<0.000000e+00> : vector<128xf32>
    %80 = vector.multi_reduction <add>, %79, %cst_43 [0] : vector<32x128xf32> to vector<128xf32>
    %81 = vector.shape_cast %80 : vector<128xf32> to vector<1x128xf32>
    %82 = arith.mulf %76, %76 : vector<1x128xf32>
    %83 = arith.subf %81, %82 : vector<1x128xf32>
    %cst_44 = arith.constant 0.000000e+00 : f32
    %84 = vector.broadcast %cst_44 : f32 to vector<1x128xf32>
    %85 = arith.maximumf %83, %84 : vector<1x128xf32>
    %c0_45 = arith.constant 0 : index
    %c0_46 = arith.constant 0 : index
    %86 = vector.load %arg10[%c0_45, %c0_46] : memref<1x128xf32, #tpu.memory_space<vmem>>, vector<1x128xf32>
    %cst_47 = arith.constant 9.99999974E-6 : f32
    %87 = vector.broadcast %cst_47 : f32 to vector<1x128xf32>
    %88 = arith.addf %85, %87 : vector<1x128xf32>
    %89 = math.rsqrt %88 : vector<1x128xf32>
    %90 = arith.mulf %86, %89 : vector<1x128xf32>
    %c0_48 = arith.constant 0 : index
    %c0_49 = arith.constant 0 : index
    %91 = vector.load %arg11[%c0_48, %c0_49] : memref<1x128xf32, #tpu.memory_space<vmem>>, vector<1x128xf32>
    %92 = arith.mulf %76, %90 : vector<1x128xf32>
    %93 = arith.subf %91, %92 : vector<1x128xf32>
    %94 = vector.broadcast %90 : vector<1x128xf32> to vector<32x128xf32>
    %95 = arith.mulf %72, %94 : vector<32x128xf32>
    %96 = vector.broadcast %93 : vector<1x128xf32> to vector<32x128xf32>
    %97 = arith.addf %95, %96 : vector<32x128xf32>
    %cst_50 = arith.constant 0.000000e+00 : f32
    %98 = vector.broadcast %cst_50 : f32 to vector<32x128xf32>
    %99 = arith.maximumf %97, %98 : vector<32x128xf32>
    %100 = vector.broadcast %5 : vector<32x1xf32> to vector<32x128xf32>
    %101 = arith.mulf %99, %100 : vector<32x128xf32>
    %102 = vector.broadcast %1 : vector<32x1xf32> to vector<32x128xf32>
    %103 = arith.mulf %101, %102 : vector<32x128xf32>
    %cst_51 = arith.constant dense<0.000000e+00> : vector<128xf32>
    %104 = vector.multi_reduction <add>, %103, %cst_51 [0] : vector<32x128xf32> to vector<128xf32>
    %105 = vector.shape_cast %104 : vector<128xf32> to vector<1x128xf32>
    %c2 = arith.constant 2 : index
    %c0_52 = arith.constant 0 : index
    %106 = vector.load %arg19[%c2, %c0_52] : memref<3x128xf32, #tpu.memory_space<vmem>>, vector<1x128xf32>
    tpu.vector_store %arg19[%c2, %c0_52], %105 {strides = array<i32>} : memref<3x128xf32, #tpu.memory_space<vmem>>, vector<1x128xf32>,
    %c0_53 = arith.constant 0 : index
    %c0_54 = arith.constant 0 : index
    %107 = vector.load %arg16[%c0_53, %c0_54] : memref<128x128xf32, #tpu.memory_space<vmem>>, vector<128x128xf32>
    %c0_55 = arith.constant 0 : index
    %c0_56 = arith.constant 0 : index
    %108 = vector.load %arg17[%c0_55, %c0_56] : memref<1x128xf32, #tpu.memory_space<vmem>>, vector<1x128xf32>
    %cst_57 = arith.constant dense<0.000000e+00> : vector<1x128xf32>
    %109 = tpu.matmul %105, %107, %cst_57 {dimension_numbers = #tpu.dot_dimension_numbers<[1], [0], [0], [1], [0, 0, 1, 1], [], []>} : vector<1x128xf32>, vector<128x128xf32>, vector<1x128xf32> -> vector<1x128xf32>
    %110 = arith.addf %64, %109 : vector<1x128xf32>
    %111 = arith.addf %110, %108 : vector<1x128xf32>
    %c0_58 = arith.constant 0 : index
    %c0_59 = arith.constant 0 : index
    %112 = vector.load %arg18[%c0_58, %c0_59] : memref<1x128xf32, #tpu.memory_space<vmem>>, vector<1x128xf32>
    tpu.vector_store %arg18[%c0_58, %c0_59], %111 {strides = array<i32>} : memref<1x128xf32, #tpu.memory_space<vmem>>, vector<1x128xf32>,
    return
  }
  func.func @transform_0(%arg0: i32) -> (i32, i32) {
    %c0_i32 = arith.constant 0 : i32
    %c0_i32_0 = arith.constant 0 : i32
    %c0_i32_1 = arith.constant 0 : i32
    return %c0_i32, %c0_i32_0 : i32, i32
  }
  func.func @transform_1(%arg0: i32) -> (i32, i32) {
    %c0_i32 = arith.constant 0 : i32
    %c0_i32_0 = arith.constant 0 : i32
    %c0_i32_1 = arith.constant 0 : i32
    return %c0_i32, %c0_i32_0 : i32, i32
  }
  func.func @transform_2(%arg0: i32) -> (i32, i32) {
    %c0_i32 = arith.constant 0 : i32
    %c0_i32_0 = arith.constant 0 : i32
    %c0_i32_1 = arith.constant 0 : i32
    return %c0_i32, %c0_i32_0 : i32, i32
  }
  func.func @transform_3(%arg0: i32) -> (i32, i32) {
    %c0_i32 = arith.constant 0 : i32
    %c0_i32_0 = arith.constant 0 : i32
    %c0_i32_1 = arith.constant 0 : i32
    return %c0_i32, %c0_i32_0 : i32, i32
  }
  func.func @transform_4(%arg0: i32) -> (i32, i32) {
    %c0_i32 = arith.constant 0 : i32
    %c0_i32_0 = arith.constant 0 : i32
    %c0_i32_1 = arith.constant 0 : i32
    return %c0_i32, %c0_i32_0 : i32, i32
  }
  func.func @transform_5(%arg0: i32) -> (i32, i32) {
    %c0_i32 = arith.constant 0 : i32
    %c0_i32_0 = arith.constant 0 : i32
    %c0_i32_1 = arith.constant 0 : i32
    return %c0_i32, %c0_i32_0 : i32, i32
  }
  func.func @transform_6(%arg0: i32) -> (i32, i32) {
    %c0_i32 = arith.constant 0 : i32
    %c0_i32_0 = arith.constant 0 : i32
    %c0_i32_1 = arith.constant 0 : i32
    return %c0_i32, %c0_i32_0 : i32, i32
  }
  func.func @transform_7(%arg0: i32) -> (i32, i32) {
    %c0_i32 = arith.constant 0 : i32
    %c0_i32_0 = arith.constant 0 : i32
    %c0_i32_1 = arith.constant 0 : i32
    return %c0_i32, %c0_i32_0 : i32, i32
  }
  func.func @transform_8(%arg0: i32) -> (i32, i32) {
    %c0_i32 = arith.constant 0 : i32
    %c0_i32_0 = arith.constant 0 : i32
    %c0_i32_1 = arith.constant 0 : i32
    return %c0_i32, %c0_i32_0 : i32, i32
  }
  func.func @transform_9(%arg0: i32) -> (i32, i32) {
    %c0_i32 = arith.constant 0 : i32
    %c0_i32_0 = arith.constant 0 : i32
    %c0_i32_1 = arith.constant 0 : i32
    return %c0_i32, %c0_i32_0 : i32, i32
  }
  func.func @transform_10(%arg0: i32) -> (i32, i32) {
    %c0_i32 = arith.constant 0 : i32
    %c0_i32_0 = arith.constant 0 : i32
    %c0_i32_1 = arith.constant 0 : i32
    return %c0_i32, %c0_i32_0 : i32, i32
  }
  func.func @transform_11(%arg0: i32) -> (i32, i32) {
    %c0_i32 = arith.constant 0 : i32
    %c0_i32_0 = arith.constant 0 : i32
    %c0_i32_1 = arith.constant 0 : i32
    return %c0_i32, %c0_i32_0 : i32, i32
  }
  func.func @transform_12(%arg0: i32) -> (i32, i32) {
    %c0_i32 = arith.constant 0 : i32
    %c0_i32_0 = arith.constant 0 : i32
    %c0_i32_1 = arith.constant 0 : i32
    return %c0_i32, %c0_i32_0 : i32, i32
  }
  func.func @transform_13(%arg0: i32) -> (i32, i32) {
    %c0_i32 = arith.constant 0 : i32
    %c0_i32_0 = arith.constant 0 : i32
    %c0_i32_1 = arith.constant 0 : i32
    return %c0_i32, %c0_i32_0 : i32, i32
  }
  func.func @transform_14(%arg0: i32) -> (i32, i32) {
    %c0_i32 = arith.constant 0 : i32
    %c0_i32_0 = arith.constant 0 : i32
    %c0_i32_1 = arith.constant 0 : i32
    return %c0_i32, %c0_i32_0 : i32, i32
  }
  func.func @transform_15(%arg0: i32) -> (i32, i32) {
    %c0_i32 = arith.constant 0 : i32
    %c0_i32_0 = arith.constant 0 : i32
    %c0_i32_1 = arith.constant 0 : i32
    return %c0_i32, %c0_i32_0 : i32, i32
  }
  func.func @transform_16(%arg0: i32) -> (i32, i32) {
    %c0_i32 = arith.constant 0 : i32
    %c0_i32_0 = arith.constant 0 : i32
    %c0_i32_1 = arith.constant 0 : i32
    return %c0_i32, %c0_i32_0 : i32, i32
  }
  func.func @transform_17(%arg0: i32) -> (i32, i32) {
    %c0_i32 = arith.constant 0 : i32
    %c0_i32_0 = arith.constant 0 : i32
    %c0_i32_1 = arith.constant 0 : i32
    return %c0_i32, %c0_i32_0 : i32, i32
  }
  func.func @transform_18(%arg0: i32) -> (i32, i32) {
    %c0_i32 = arith.constant 0 : i32
    %c0_i32_0 = arith.constant 0 : i32
    %c0_i32_1 = arith.constant 0 : i32
    return %c0_i32, %c0_i32_0 : i32, i32
  }
}

</mosaic_0001>

<llo_original>
// kernel: gcn_forward.1
$region0: #{gcn_forward.1}
  #allocation0 [shape = 'u32[]', space=smem, size = 0x4, offset = 0x4, fixed_abs, tag = 'smem constant byte address 0x4 - core index']
  #allocation1 [shape = 'u32[144,128]{1,0:T(1,128)}', space=vmem, size = 0x12000, scoped, tag = 'internal scratch']
  %s0 = inlined_call_operand.vmem [shape: bf16[32,32], index: 0, kind: input, shape index: {}]
  %s1 = inlined_call_operand.vmem [shape: f32[32,128], index: 1, kind: input, shape index: {}]
  %s2 = inlined_call_operand.vmem [shape: f32[32,1], index: 2, kind: input, shape index: {}]
  %s3 = inlined_call_operand.vmem [shape: bf16[128,128], index: 3, kind: input, shape index: {}]
  %s4 = inlined_call_operand.vmem [shape: f32[1,128], index: 4, kind: input, shape index: {}]
  %s5 = inlined_call_operand.vmem [shape: f32[1,128], index: 5, kind: input, shape index: {}]
  %s6 = inlined_call_operand.vmem [shape: f32[1,128], index: 6, kind: input, shape index: {}]
  %s7 = inlined_call_operand.vmem [shape: bf16[128,128], index: 7, kind: input, shape index: {}]
  %s8 = inlined_call_operand.vmem [shape: f32[1,128], index: 8, kind: input, shape index: {}]
  %s9 = inlined_call_operand.vmem [shape: f32[1,128], index: 9, kind: input, shape index: {}]
  %s10 = inlined_call_operand.vmem [shape: f32[1,128], index: 10, kind: input, shape index: {}]
  %s11 = inlined_call_operand.vmem [shape: f32[128,128], index: 11, kind: input, shape index: {}]
  %s12 = inlined_call_operand.vmem [shape: f32[1,128], index: 12, kind: input, shape index: {}]
  %s13 = inlined_call_operand.vmem [shape: f32[128,128], index: 13, kind: input, shape index: {}]
  %s14 = inlined_call_operand.vmem [shape: f32[1,128], index: 14, kind: input, shape index: {}]
  %s15 = inlined_call_operand.vmem [shape: f32[128,128], index: 15, kind: input, shape index: {}]
  %s16 = inlined_call_operand.vmem [shape: f32[1,128], index: 16, kind: input, shape index: {}]
  %s17 = inlined_call_operand.hbm [shape: f32[1,128], index: 17, kind: output, shape index: {0}]
  %s18 = inlined_call_operand.vmem [shape: f32[3,128], index: 18, kind: output, shape index: {1}]
  %19 = xla_tuple %s17, %s18
  %s20 = sld [smem:[#allocation0]]
  $region86: #{gcn_forward.1} parent=0
    _
  %s22 = ssub.s32 1, %s20
  %s23 = scalar_select 0, %s22, %s20
  $region1: #{gcn_forward.1} parent=0
    #allocation2 [shape = 'u8[512]{0}', space=vmem, size = 0x400, scoped, tag = 'output window, operand 0, single buffered']
    #allocation3 [shape = 's32[1]{0}', space=sflag, size = 0x4, scoped, tag = 'scoped memory for gcn_forward.1']
    %24 = vsyncpa [#allocation3], 0
    // Predicated region
    $region2: #{gcn_forward.1} parent=1 // pred_check
      _
    $region3: #{gcn_forward.1} parent=1 // pred_check_branch
      %26 = sbr.rel (0) target = $region5
    $region4: #{gcn_forward.1} parent=1 // pred_region
      _
    $region5: #{gcn_forward.1} parent=1 // pred_fallthru
      _
    // Predicated region
    $region6: #{gcn_forward.1} parent=1 // pred_check
      _
    $region7: #{gcn_forward.1} parent=1 // pred_check_branch
      %28 = sbr.rel (0) target = $region9
    $region8: #{gcn_forward.1} parent=1 // pred_region
      _
    $region9: #{gcn_forward.1} parent=1 // pred_fallthru
      _
    // Predicated region
    $region10: #{gcn_forward.1} parent=1 // pred_check
      _
    $region11: #{gcn_forward.1} parent=1 // pred_check_branch
      %30 = sbr.rel (0) target = $region13
    $region12: #{gcn_forward.1} parent=1 // pred_region
      _
    $region13: #{gcn_forward.1} parent=1 // pred_fallthru
      _
    // Predicated region
    $region14: #{gcn_forward.1} parent=1 // pred_check
      _
    $region15: #{gcn_forward.1} parent=1 // pred_check_branch
      %32 = sbr.rel (0) target = $region17
    $region16: #{gcn_forward.1} parent=1 // pred_region
      _
    $region17: #{gcn_forward.1} parent=1 // pred_fallthru
      _
    // Predicated region
    $region18: #{gcn_forward.1} parent=1 // pred_check
      _
    $region19: #{gcn_forward.1} parent=1 // pred_check_branch
      %34 = sbr.rel (0) target = $region21
    $region20: #{gcn_forward.1} parent=1 // pred_region
      _
    $region21: #{gcn_forward.1} parent=1 // pred_fallthru
      _
    // Predicated region
    $region22: #{gcn_forward.1} parent=1 // pred_check
      _
    $region23: #{gcn_forward.1} parent=1 // pred_check_branch
      %36 = sbr.rel (0) target = $region25
    $region24: #{gcn_forward.1} parent=1 // pred_region
      _
    $region25: #{gcn_forward.1} parent=1 // pred_fallthru
      _
    // Predicated region
    $region26: #{gcn_forward.1} parent=1 // pred_check
      _
    $region27: #{gcn_forward.1} parent=1 // pred_check_branch
      %38 = sbr.rel (0) target = $region29
    $region28: #{gcn_forward.1} parent=1 // pred_region
      _
    $region29: #{gcn_forward.1} parent=1 // pred_fallthru
      _
    // Predicated region
    $region30: #{gcn_forward.1} parent=1 // pred_check
      _
    $region31: #{gcn_forward.1} parent=1 // pred_check_branch
      %40 = sbr.rel (0) target = $region33
    $region32: #{gcn_forward.1} parent=1 // pred_region
      _
    $region33: #{gcn_forward.1} parent=1 // pred_fallthru
      _
    // Predicated region
    $region34: #{gcn_forward.1} parent=1 // pred_check
      _
    $region35: #{gcn_forward.1} parent=1 // pred_check_branch
      %42 = sbr.rel (0) target = $region37
    $region36: #{gcn_forward.1} parent=1 // pred_region
      _
    $region37: #{gcn_forward.1} parent=1 // pred_fallthru
      _
    // Predicated region
    $region38: #{gcn_forward.1} parent=1 // pred_check
      _
    $region39: #{gcn_forward.1} parent=1 // pred_check_branch
      %44 = sbr.rel (0) target = $region41
    $region40: #{gcn_forward.1} parent=1 // pred_region
      _
    $region41: #{gcn_forward.1} parent=1 // pred_fallthru
      _
    // Predicated region
    $region42: #{gcn_forward.1} parent=1 // pred_check
      _
    $region43: #{gcn_forward.1} parent=1 // pred_check_branch
      %46 = sbr.rel (0) target = $region45
    $region44: #{gcn_forward.1} parent=1 // pred_region
      _
    $region45: #{gcn_forward.1} parent=1 // pred_fallthru
      _
    // Predicated region
    $region46: #{gcn_forward.1} parent=1 // pred_check
      _
    $region47: #{gcn_forward.1} parent=1 // pred_check_branch
      %48 = sbr.rel (0) target = $region49
    $region48: #{gcn_forward.1} parent=1 // pred_region
      _
    $region49: #{gcn_forward.1} parent=1 // pred_fallthru
      _
    // Predicated region
    $region50: #{gcn_forward.1} parent=1 // pred_check
      _
    $region51: #{gcn_forward.1} parent=1 // pred_check_branch
      %50 = sbr.rel (0) target = $region53
    $region52: #{gcn_forward.1} parent=1 // pred_region
      _
    $region53: #{gcn_forward.1} parent=1 // pred_fallthru
      _
    // Predicated region
    $region54: #{gcn_forward.1} parent=1 // pred_check
      _
    $region55: #{gcn_forward.1} parent=1 // pred_check_branch
      %52 = sbr.rel (0) target = $region57
    $region56: #{gcn_forward.1} parent=1 // pred_region
      _
    $region57: #{gcn_forward.1} parent=1 // pred_fallthru
      _
    // Predicated region
    $region58: #{gcn_forward.1} parent=1 // pred_check
      _
    $region59: #{gcn_forward.1} parent=1 // pred_check_branch
      %54 = sbr.rel (0) target = $region61
    $region60: #{gcn_forward.1} parent=1 // pred_region
      _
    $region61: #{gcn_forward.1} parent=1 // pred_fallthru
      _
    // Predicated region
    $region62: #{gcn_forward.1} parent=1 // pred_check
      _
    $region63: #{gcn_forward.1} parent=1 // pred_check_branch
      %56 = sbr.rel (0) target = $region65
    $region64: #{gcn_forward.1} parent=1 // pred_region
      _
    $region65: #{gcn_forward.1} parent=1 // pred_fallthru
      _
    // Predicated region
    $region66: #{gcn_forward.1} parent=1 // pred_check
      _
    $region67: #{gcn_forward.1} parent=1 // pred_check_branch
      %58 = sbr.rel (0) target = $region69
    $region68: #{gcn_forward.1} parent=1 // pred_region
      _
    $region69: #{gcn_forward.1} parent=1 // pred_fallthru
      _
    %v60 = vld [vmem:[%s0] sm:$0xf]
    %v61 = vld [vmem:[%s0 + $0x4] sm:$0xf]
    %v62 = vld [vmem:[%s0 + $0x8] sm:$0xf]
    %v63 = vld [vmem:[%s0 + $0xc] sm:$0xf]
    %v64 = vld [vmem:[%s2] sm:$0xff]
    %v65 = vld [vmem:[%s2 + $0x8] sm:$0xff]
    %v66 = vld [vmem:[%s2 + $0x10] sm:$0xff]
    %v67 = vld [vmem:[%s2 + $0x18] sm:$0xff]
    %vm68 = vcmp.gt.f32.partialorder %v64, 0.0
    %vm69 = vcmp.gt.f32.partialorder %v65, 0.0
    %vm70 = vcmp.gt.f32.partialorder %v66, 0.0
    %vm71 = vcmp.gt.f32.partialorder %v67, 0.0
    %v72 = vsel %vm68, 1, 0
    %v73 = vsel %vm69, 1, 0
    %v74 = vsel %vm70, 1, 0
    %v75 = vsel %vm71, 1, 0
    %v76 = vcvt.s32.f32 %v72
    %v77 = vcvt.s32.f32 %v73
    %v78 = vcvt.s32.f32 %v74
    %v79 = vcvt.s32.f32 %v75
    %v80 = vld [vmem:[%s1] sm:$0xff]
    %v81 = vld [vmem:[%s1 + $0x8] sm:$0xff]
    %v82 = vld [vmem:[%s1 + $0x10] sm:$0xff]
    %v83 = vld [vmem:[%s1 + $0x18] sm:$0xff]
    %85 = vset.pattern.permute.xlu0 0
    %86 = vperm.xlu0 %85, %v64
    %v87 = vpop.permute.xlu0 %86
    %90 = vset.pattern.permute.xlu0 0
    %91 = vperm.xlu0 %90, %v65
    %v92 = vpop.permute.xlu0 %91
    %95 = vset.pattern.permute.xlu0 0
    %96 = vperm.xlu0 %95, %v66
    %v97 = vpop.permute.xlu0 %96
    %100 = vset.pattern.permute.xlu0 0
    %101 = vperm.xlu0 %100, %v67
    %v102 = vpop.permute.xlu0 %101
    %v104 = vmul.f32 %v80, %v87
    %v105 = vmul.f32 %v81, %v92
    %v106 = vmul.f32 %v82, %v97
    %v107 = vmul.f32 %v83, %v102
    %v108 = vadd.f32 %v104, %v105
    %v109 = vadd.f32 %v108, %v106
    %v110 = vadd.f32 %v109, %v107
    %v111 = vrot.slane %v110, 4
    %v112 = vadd.f32 %v110, %v111
    %v113 = vrot.slane %v112, 2
    %v114 = vadd.f32 %v112, %v113
    %v115 = vrot.slane %v114, 1
    %v116 = vadd.f32 %v114, %v115
    %117 = vst [vmem:[%s18] sm:$0x1] %v116
    %v118 = vld [vmem:[%s11] sm:$0xff]
    %v119 = vld [vmem:[%s11 + $0x8] sm:$0xff]
    %v120 = vld [vmem:[%s11 + $0x10] sm:$0xff]
    %v121 = vld [vmem:[%s11 + $0x18] sm:$0xff]
    %v122 = vld [vmem:[%s11 + $0x20] sm:$0xff]
    %v123 = vld [vmem:[%s11 + $0x28] sm:$0xff]
    %v124 = vld [vmem:[%s11 + $0x30] sm:$0xff]
    %v125 = vld [vmem:[%s11 + $0x38] sm:$0xff]
    %v126 = vld [vmem:[%s11 + $0x40] sm:$0xff]
    %v127 = vld [vmem:[%s11 + $0x48] sm:$0xff]
    %v128 = vld [vmem:[%s11 + $0x50] sm:$0xff]
    %v129 = vld [vmem:[%s11 + $0x58] sm:$0xff]
    %v130 = vld [vmem:[%s11 + $0x60] sm:$0xff]
    %v131 = vld [vmem:[%s11 + $0x68] sm:$0xff]
    %v132 = vld [vmem:[%s11 + $0x70] sm:$0xff]
    %v133 = vld [vmem:[%s11 + $0x78] sm:$0xff]
    %v134 = vld [vmem:[%s12] sm:$0x1]
    %135 = vmatprep.subr.mxu0 0.0
    %136 = vmatpush1.msra.mxu0 %v118
    %137 = vmatprep.subr.mxu0 0.0
    %138 = vmatpush1.msra.mxu0 %v119
    %139 = vmatprep.subr.mxu0 0.0
    %140 = vmatpush1.msra.mxu0 %v120
    %141 = vmatprep.subr.mxu0 0.0
    %142 = vmatpush1.msra.mxu0 %v121
    %143 = vmatprep.subr.mxu0 0.0
    %144 = vmatpush1.msra.mxu0 %v122
    %145 = vmatprep.subr.mxu0 0.0
    %146 = vmatpush1.msra.mxu0 %v123
    %147 = vmatprep.subr.mxu0 0.0
    %148 = vmatpush1.msra.mxu0 %v124
    %149 = vmatprep.subr.mxu0 0.0
    %150 = vmatpush1.msra.mxu0 %v125
    %151 = vmatprep.subr.mxu0 0.0
    %152 = vmatpush1.msra.mxu0 %v126
    %153 = vmatprep.subr.mxu0 0.0
    %154 = vmatpush1.msra.mxu0 %v127
    %155 = vmatprep.subr.mxu0 0.0
    %156 = vmatpush1.msra.mxu0 %v128
    %157 = vmatprep.subr.mxu0 0.0
    %158 = vmatpush1.msra.mxu0 %v129
    %159 = vmatprep.subr.mxu0 0.0
    %160 = vmatpush1.msra.mxu0 %v130
    %161 = vmatprep.subr.mxu0 0.0
    %162 = vmatpush1.msra.mxu0 %v131
    %163 = vmatprep.subr.mxu0 0.0
    %164 = vmatpush1.msra.mxu0 %v132
    %165 = vmatprep.subr.mxu0 0.0
    %166 = vmatpush1.msra.mxu0 %v133
    %167 = vmatprep.subr.mxu0 0.0
    %168 = vmatpush1.msra.mxu0 0.0
    %169 = vmatprep.subr.mxu0 0.0
    %170 = vmatpush1.msra.mxu0 0.0
    %171 = vmatprep.subr.mxu0 0.0
    %172 = vmatpush1.msra.mxu0 0.0
    %173 = vmatprep.subr.mxu0 0.0
    %174 = vmatpush1.msra.mxu0 0.0
    %175 = vmatprep.subr.mxu0 0.0
    %176 = vmatpush1.msra.mxu0 0.0
    %177 = vmatprep.subr.mxu0 0.0
    %178 = vmatpush1.msra.mxu0 0.0
    %179 = vmatprep.subr.mxu0 0.0
    %180 = vmatpush1.msra.mxu0 0.0
    %181 = vmatprep.subr.mxu0 0.0
    %182 = vmatpush1.msra.mxu0 0.0
    %183 = vmatprep.subr.mxu0 0.0
    %184 = vmatpush1.msra.mxu0 0.0
    %185 = vmatprep.subr.mxu0 0.0
    %186 = vmatpush1.msra.mxu0 0.0
    %187 = vmatprep.subr.mxu0 0.0
    %188 = vmatpush1.msra.mxu0 0.0
    %189 = vmatprep.subr.mxu0 0.0
    %190 = vmatpush1.msra.mxu0 0.0
    %191 = vmatprep.subr.mxu0 0.0
    %192 = vmatpush1.msra.mxu0 0.0
    %193 = vmatprep.subr.mxu0 0.0
    %194 = vmatpush1.msra.mxu0 0.0
    %195 = vmatprep.subr.mxu0 0.0
    %196 = vmatpush1.msra.mxu0 0.0
    %197 = vmatprep.subr.mxu0 0.0
    %198 = vmatpush1.msra.mxu0 0.0
    %199 = vmatprep.mubr.f32.mxu0 0.0
    %200 = vmatmul.mubr.f32.gmra.mrb[0].mxu0 %v116
    %v201 = vpop.f32.mrb[0].mxu0
    %v202 = vadd.f32 %v134, %v201
    %v203 = vpop.f32.mrb[0].mxu0
    %204 = vdwg.mxu0
    %v205 = vpack.c.bf16 %v81, %v80
    %v206 = vpack.c.bf16 %v83, %v82
    %v207 = vld [vmem:[%s3] sm:$0xf]
    %v208 = vld [vmem:[%s3 + $0x4] sm:$0xf]
    %v209 = vld [vmem:[%s3 + $0x8] sm:$0xf]
    %v210 = vld [vmem:[%s3 + $0xc] sm:$0xf]
    %v211 = vld [vmem:[%s3 + $0x10] sm:$0xf]
    %v212 = vld [vmem:[%s3 + $0x14] sm:$0xf]
    %v213 = vld [vmem:[%s3 + $0x18] sm:$0xf]
    %v214 = vld [vmem:[%s3 + $0x1c] sm:$0xf]
    %v215 = vld [vmem:[%s3 + $0x20] sm:$0xf]
    %v216 = vld [vmem:[%s3 + $0x24] sm:$0xf]
    %v217 = vld [vmem:[%s3 + $0x28] sm:$0xf]
    %v218 = vld [vmem:[%s3 + $0x2c] sm:$0xf]
    %v219 = vld [vmem:[%s3 + $0x30] sm:$0xf]
    %v220 = vld [vmem:[%s3 + $0x34] sm:$0xf]
    %v221 = vld [vmem:[%s3 + $0x38] sm:$0xf]
    %v222 = vld [vmem:[%s3 + $0x3c] sm:$0xf]
    %v239 = vunpack.c.l.b16 %v207
    %v240 = vunpack.c.l.b16 %v208
    %v241 = vunpack.c.l.b16 %v209
    %v242 = vunpack.c.l.b16 %v210
    %v243 = vunpack.c.l.b16 %v211
    %v244 = vunpack.c.l.b16 %v212
    %v245 = vunpack.c.l.b16 %v213
    %v246 = vunpack.c.l.b16 %v214
    %v247 = vunpack.c.l.b16 %v215
    %v248 = vunpack.c.l.b16 %v216
    %v249 = vunpack.c.l.b16 %v217
    %v250 = vunpack.c.l.b16 %v218
    %v251 = vunpack.c.l.b16 %v219
    %v252 = vunpack.c.l.b16 %v220
    %v253 = vunpack.c.l.b16 %v221
    %v254 = vunpack.c.l.b16 %v222
    %v255 = vpack.c.b16 %v240, %v239
    %v256 = vpack.c.b16 %v242, %v241
    %v257 = vpack.c.b16 %v244, %v243
    %v258 = vpack.c.b16 %v246, %v245
    %v259 = vpack.c.b16 %v248, %v247
    %v260 = vpack.c.b16 %v250, %v249
    %v261 = vpack.c.b16 %v252, %v251
    %v262 = vpack.c.b16 %v254, %v253
    %271 = vmatprep.subr.bf16.mxu0 0
    %272 = vmatpush1.bf16.msra.mxu0 %v255
    %273 = vmatprep.subr.bf16.mxu0 0
    %274 = vmatpush1.bf16.msra.mxu0 %v256
    %275 = vmatprep.subr.bf16.mxu0 0
    %276 = vmatpush1.bf16.msra.mxu0 %v257
    %277 = vmatprep.subr.bf16.mxu0 0
    %278 = vmatpush1.bf16.msra.mxu0 %v258
    %279 = vmatprep.subr.bf16.mxu0 0
    %280 = vmatpush1.bf16.msra.mxu0 %v259
    %281 = vmatprep.subr.bf16.mxu0 0
    %282 = vmatpush1.bf16.msra.mxu0 %v260
    %283 = vmatprep.subr.bf16.mxu0 0
    %284 = vmatpush1.bf16.msra.mxu0 %v261
    %285 = vmatprep.subr.bf16.mxu0 0
    %286 = vmatpush1.bf16.msra.mxu0 %v262
    %287 = vmatprep.subr.bf16.mxu0 0
    %288 = vmatpush1.bf16.msra.mxu0 0
    %289 = vmatprep.subr.bf16.mxu0 0
    %290 = vmatpush1.bf16.msra.mxu0 0
    %291 = vmatprep.subr.bf16.mxu0 0
    %292 = vmatpush1.bf16.msra.mxu0 0
    %293 = vmatprep.subr.bf16.mxu0 0
    %294 = vmatpush1.bf16.msra.mxu0 0
    %295 = vmatprep.subr.bf16.mxu0 0
    %296 = vmatpush1.bf16.msra.mxu0 0
    %297 = vmatprep.subr.bf16.mxu0 0
    %298 = vmatpush1.bf16.msra.mxu0 0
    %299 = vmatprep.subr.bf16.mxu0 0
    %300 = vmatpush1.bf16.msra.mxu0 0
    %301 = vmatprep.subr.bf16.mxu0 0
    %302 = vmatpush1.bf16.msra.mxu0 0
    %303 = vmatprep.mubr.bf16.mxu0 0
    %304 = vmatmul.mubr.bf16.gmra.mrb[0].mxu0 %v205
    %v305 = vpop.f32.mrb[0].mxu0
    %v306 = vadd.f32 0.0, %v305
    %v307 = vpop.f32.mrb[0].mxu0
    %v308 = vpop.f32.mrb[0].mxu0
    %v309 = vadd.f32 0.0, %v308
    %v310 = vpop.f32.mrb[0].mxu0
    %311 = vmatprep.mubr.bf16.mxu0 0
    %312 = vmatmul.mubr.bf16.gmra.mrb[0].mxu0 %v206
    %v313 = vpop.f32.mrb[0].mxu0
    %v314 = vadd.f32 0.0, %v313
    %v315 = vpop.f32.mrb[0].mxu0
    %v316 = vpop.f32.mrb[0].mxu0
    %v317 = vadd.f32 0.0, %v316
    %v318 = vpop.f32.mrb[0].mxu0
    %319 = vdwg.mxu0
    %v320 = vpack.c.bf16 %v309, %v306
    %v321 = vpack.c.bf16 %v317, %v314
    %v322 = vld [vmem:[%s4] sm:$0x1]
    %v324 = vlaneseq
    %v325 = vshrl.u32 %v324, 7
    %v326 = vsub.s32 0, %v325
    %v327 = vrot.slane %v322, %v326
    %v333 = vunpack.c.l.b16 %v60
    %v334 = vunpack.c.l.b16 %v61
    %v335 = vunpack.c.l.b16 %v62
    %v336 = vunpack.c.l.b16 %v63
    %v337 = vpack.c.b16 %v334, %v333
    %v338 = vpack.c.b16 %v336, %v335
    %vm339 = vcmask 261120
    %v341 = vsel %vm339, %v337, 0
    %v344 = vsel %vm339, %v338, 0
    %346 = vmatprep.subr.bf16.mxu0 0
    %347 = vmatpush1.bf16.msra.mxu0 %v320
    %348 = vmatprep.subr.bf16.mxu0 0
    %349 = vmatpush1.bf16.msra.mxu0 %v321
    %350 = vmatprep.subr.bf16.mxu0 0
    %351 = vmatpush1.bf16.msra.mxu0 0
    %352 = vmatprep.subr.bf16.mxu0 0
    %353 = vmatpush1.bf16.msra.mxu0 0
    %354 = vmatprep.subr.bf16.mxu0 0
    %355 = vmatpush1.bf16.msra.mxu0 0
    %356 = vmatprep.subr.bf16.mxu0 0
    %357 = vmatpush1.bf16.msra.mxu0 0
    %358 = vmatprep.subr.bf16.mxu0 0
    %359 = vmatpush1.bf16.msra.mxu0 0
    %360 = vmatprep.subr.bf16.mxu0 0
    %361 = vmatpush1.bf16.msra.mxu0 0
    %362 = vmatprep.subr.bf16.mxu0 0
    %363 = vmatpush1.bf16.msra.mxu0 0
    %364 = vmatprep.subr.bf16.mxu0 0
    %365 = vmatpush1.bf16.msra.mxu0 0
    %366 = vmatprep.subr.bf16.mxu0 0
    %367 = vmatpush1.bf16.msra.mxu0 0
    %368 = vmatprep.subr.bf16.mxu0 0
    %369 = vmatpush1.bf16.msra.mxu0 0
    %370 = vmatprep.subr.bf16.mxu0 0
    %371 = vmatpush1.bf16.msra.mxu0 0
    %372 = vmatprep.subr.bf16.mxu0 0
    %373 = vmatpush1.bf16.msra.mxu0 0
    %374 = vmatprep.subr.bf16.mxu0 0
    %375 = vmatpush1.bf16.msra.mxu0 0
    %376 = vmatprep.subr.bf16.mxu0 0
    %377 = vmatpush1.bf16.msra.mxu0 0
    %378 = vmatprep.mubr.bf16.mxu0 0
    %379 = vmatmul.mubr.bf16.gmra.mrb[0].mxu0 %v341
    %v380 = vpop.f32.mrb[0].mxu0
    %v381 = vadd.f32 %v327, %v380
    %v382 = vpop.f32.mrb[0].mxu0
    %v383 = vpop.f32.mrb[0].mxu0
    %v384 = vadd.f32 %v327, %v383
    %v385 = vpop.f32.mrb[0].mxu0
    %386 = vmatprep.mubr.bf16.mxu0 0
    %387 = vmatmul.mubr.bf16.gmra.mrb[0].mxu0 %v344
    %v388 = vpop.f32.mrb[0].mxu0
    %v389 = vadd.f32 %v327, %v388
    %v390 = vpop.f32.mrb[0].mxu0
    %v391 = vpop.f32.mrb[0].mxu0
    %v392 = vadd.f32 %v327, %v391
    %v393 = vpop.f32.mrb[0].mxu0
    %394 = vdwg.mxu0
    %v395 = vmul.f32 %v381, %v87
    %v396 = vmul.f32 %v384, %v92
    %v397 = vmul.f32 %v389, %v97
    %v398 = vmul.f32 %v392, %v102
    %v399 = vadd.f32 %v395, %v396
    %v400 = vadd.f32 %v399, %v397
    %v401 = vadd.f32 %v400, %v398
    %v402 = vrot.slane %v401, 4
    %v403 = vadd.f32 %v401, %v402
    %v404 = vrot.slane %v403, 2
    %v405 = vadd.f32 %v403, %v404
    %v406 = vrot.slane %v405, 1
    %v407 = vadd.f32 %v405, %v406
    %v408 = vmul.f32 %v381, %v381
    %v409 = vmul.f32 %v384, %v384
    %v410 = vmul.f32 %v389, %v389
    %v411 = vmul.f32 %v392, %v392
    %v412 = vmul.f32 %v408, %v87
    %v413 = vmul.f32 %v409, %v92
    %v414 = vmul.f32 %v410, %v97
    %v415 = vmul.f32 %v411, %v102
    %v416 = vadd.f32 %v412, %v413
    %v417 = vadd.f32 %v416, %v414
    %v418 = vadd.f32 %v417, %v415
    %v419 = vrot.slane %v418, 4
    %v420 = vadd.f32 %v418, %v419
    %v421 = vrot.slane %v420, 2
    %v422 = vadd.f32 %v420, %v421
    %v423 = vrot.slane %v422, 1
    %v424 = vadd.f32 %v422, %v423
    %v425 = vmul.f32 %v407, %v407
    %v426 = vsub.f32 %v424, %v425
    %v427 = vmax.f32 %v426, 0.0
    %v428 = vld [vmem:[%s5] sm:$0x1]
    %v429 = vadd.f32 %v427, 1e-05
    %v430 = vrsqrt.pop %v429
    %v431 = vmul.f32 %v428, %v430
    %v432 = vld [vmem:[%s6] sm:$0x1]
    %v433 = vmul.f32 %v407, %v431
    %v434 = vsub.f32 %v432, %v433
    %v436 = vlaneseq
    %v437 = vshrl.u32 %v436, 7
    %v438 = vsub.s32 0, %v437
    %v439 = vrot.slane %v431, %v438
    %v441 = vmul.f32 %v381, %v439
    %v442 = vmul.f32 %v384, %v439
    %v443 = vmul.f32 %v389, %v439
    %v444 = vmul.f32 %v392, %v439
    %v446 = vlaneseq
    %v447 = vshrl.u32 %v446, 7
    %v448 = vsub.s32 0, %v447
    %v449 = vrot.slane %v434, %v448
    %v451 = vadd.f32 %v441, %v449
    %v452 = vadd.f32 %v442, %v449
    %v453 = vadd.f32 %v443, %v449
    %v454 = vadd.f32 %v444, %v449
    %v455 = vmax.f32 %v451, 0.0
    %v456 = vmax.f32 %v452, 0.0
    %v457 = vmax.f32 %v453, 0.0
    %v458 = vmax.f32 %v454, 0.0
    %460 = vset.pattern.permute.xlu0 0
    %461 = vperm.xlu0 %460, %v76
    %v462 = vpop.permute.xlu0 %461
    %465 = vset.pattern.permute.xlu0 0
    %466 = vperm.xlu0 %465, %v77
    %v467 = vpop.permute.xlu0 %466
    %470 = vset.pattern.permute.xlu0 0
    %471 = vperm.xlu0 %470, %v78
    %v472 = vpop.permute.xlu0 %471
    %475 = vset.pattern.permute.xlu0 0
    %476 = vperm.xlu0 %475, %v79
    %v477 = vpop.permute.xlu0 %476
    %v479 = vmul.f32 %v455, %v462
    %v480 = vmul.f32 %v456, %v467
    %v481 = vmul.f32 %v457, %v472
    %v482 = vmul.f32 %v458, %v477
    %v483 = vmul.f32 %v479, %v87
    %v484 = vmul.f32 %v480, %v92
    %v485 = vmul.f32 %v481, %v97
    %v486 = vmul.f32 %v482, %v102
    %v487 = vadd.f32 %v483, %v484
    %v488 = vadd.f32 %v487, %v485
    %v489 = vadd.f32 %v488, %v486
    %v490 = vrot.slane %v489, 4
    %v491 = vadd.f32 %v489, %v490
    %v492 = vrot.slane %v491, 2
    %v493 = vadd.f32 %v491, %v492
    %v494 = vrot.slane %v493, 1
    %v495 = vadd.f32 %v493, %v494
    %496 = vst [vmem:[%s18 + $0x1] sm:$0x1] %v495
    %v497 = vld [vmem:[%s13] sm:$0xff]
    %v498 = vld [vmem:[%s13 + $0x8] sm:$0xff]
    %v499 = vld [vmem:[%s13 + $0x10] sm:$0xff]
    %v500 = vld [vmem:[%s13 + $0x18] sm:$0xff]
    %v501 = vld [vmem:[%s13 + $0x20] sm:$0xff]
    %v502 = vld [vmem:[%s13 + $0x28] sm:$0xff]
    %v503 = vld [vmem:[%s13 + $0x30] sm:$0xff]
    %v504 = vld [vmem:[%s13 + $0x38] sm:$0xff]
    %v505 = vld [vmem:[%s13 + $0x40] sm:$0xff]
    %v506 = vld [vmem:[%s13 + $0x48] sm:$0xff]
    %v507 = vld [vmem:[%s13 + $0x50] sm:$0xff]
    %v508 = vld [vmem:[%s13 + $0x58] sm:$0xff]
    %v509 = vld [vmem:[%s13 + $0x60] sm:$0xff]
    %v510 = vld [vmem:[%s13 + $0x68] sm:$0xff]
    %v511 = vld [vmem:[%s13 + $0x70] sm:$0xff]
    %v512 = vld [vmem:[%s13 + $0x78] sm:$0xff]
    %v513 = vld [vmem:[%s14] sm:$0x1]
    %514 = vmatprep.subr.mxu0 0.0
    %515 = vmatpush1.msra.mxu0 %v497
    %516 = vmatprep.subr.mxu0 0.0
    %517 = vmatpush1.msra.mxu0 %v498
    %518 = vmatprep.subr.mxu0 0.0
    %519 = vmatpush1.msra.mxu0 %v499
    %520 = vmatprep.subr.mxu0 0.0
    %521 = vmatpush1.msra.mxu0 %v500
    %522 = vmatprep.subr.mxu0 0.0
    %523 = vmatpush1.msra.mxu0 %v501
    %524 = vmatprep.subr.mxu0 0.0
    %525 = vmatpush1.msra.mxu0 %v502
    %526 = vmatprep.subr.mxu0 0.0
    %527 = vmatpush1.msra.mxu0 %v503
    %528 = vmatprep.subr.mxu0 0.0
    %529 = vmatpush1.msra.mxu0 %v504
    %530 = vmatprep.subr.mxu0 0.0
    %531 = vmatpush1.msra.mxu0 %v505
    %532 = vmatprep.subr.mxu0 0.0
    %533 = vmatpush1.msra.mxu0 %v506
    %534 = vmatprep.subr.mxu0 0.0
    %535 = vmatpush1.msra.mxu0 %v507
    %536 = vmatprep.subr.mxu0 0.0
    %537 = vmatpush1.msra.mxu0 %v508
    %538 = vmatprep.subr.mxu0 0.0
    %539 = vmatpush1.msra.mxu0 %v509
    %540 = vmatprep.subr.mxu0 0.0
    %541 = vmatpush1.msra.mxu0 %v510
    %542 = vmatprep.subr.mxu0 0.0
    %543 = vmatpush1.msra.mxu0 %v511
    %544 = vmatprep.subr.mxu0 0.0
    %545 = vmatpush1.msra.mxu0 %v512
    %546 = vmatprep.subr.mxu0 0.0
    %547 = vmatpush1.msra.mxu0 0.0
    %548 = vmatprep.subr.mxu0 0.0
    %549 = vmatpush1.msra.mxu0 0.0
    %550 = vmatprep.subr.mxu0 0.0
    %551 = vmatpush1.msra.mxu0 0.0
    %552 = vmatprep.subr.mxu0 0.0
    %553 = vmatpush1.msra.mxu0 0.0
    %554 = vmatprep.subr.mxu0 0.0
    %555 = vmatpush1.msra.mxu0 0.0
    %556 = vmatprep.subr.mxu0 0.0
    %557 = vmatpush1.msra.mxu0 0.0
    %558 = vmatprep.subr.mxu0 0.0
    %559 = vmatpush1.msra.mxu0 0.0
    %560 = vmatprep.subr.mxu0 0.0
    %561 = vmatpush1.msra.mxu0 0.0
    %562 = vmatprep.subr.mxu0 0.0
    %563 = vmatpush1.msra.mxu0 0.0
    %564 = vmatprep.subr.mxu0 0.0
    %565 = vmatpush1.msra.mxu0 0.0
    %566 = vmatprep.subr.mxu0 0.0
    %567 = vmatpush1.msra.mxu0 0.0
    %568 = vmatprep.subr.mxu0 0.0
    %569 = vmatpush1.msra.mxu0 0.0
    %570 = vmatprep.subr.mxu0 0.0
    %571 = vmatpush1.msra.mxu0 0.0
    %572 = vmatprep.subr.mxu0 0.0
    %573 = vmatpush1.msra.mxu0 0.0
    %574 = vmatprep.subr.mxu0 0.0
    %575 = vmatpush1.msra.mxu0 0.0
    %576 = vmatprep.subr.mxu0 0.0
    %577 = vmatpush1.msra.mxu0 0.0
    %578 = vmatprep.mubr.f32.mxu0 0.0
    %579 = vmatmul.mubr.f32.gmra.mrb[0].mxu0 %v495
    %v580 = vpop.f32.mrb[0].mxu0
    %v581 = vadd.f32 0.0, %v580
    %v582 = vpop.f32.mrb[0].mxu0
    %583 = vdwg.mxu0
    %v584 = vadd.f32 %v202, %v581
    %v585 = vadd.f32 %v584, %v513
    %v586 = vpack.c.bf16 %v480, %v479
    %v587 = vpack.c.bf16 %v482, %v481
    %v588 = vld [vmem:[%s7] sm:$0xf]
    %v589 = vld [vmem:[%s7 + $0x4] sm:$0xf]
    %v590 = vld [vmem:[%s7 + $0x8] sm:$0xf]
    %v591 = vld [vmem:[%s7 + $0xc] sm:$0xf]
    %v592 = vld [vmem:[%s7 + $0x10] sm:$0xf]
    %v593 = vld [vmem:[%s7 + $0x14] sm:$0xf]
    %v594 = vld [vmem:[%s7 + $0x18] sm:$0xf]
    %v595 = vld [vmem:[%s7 + $0x1c] sm:$0xf]
    %v596 = vld [vmem:[%s7 + $0x20] sm:$0xf]
    %v597 = vld [vmem:[%s7 + $0x24] sm:$0xf]
    %v598 = vld [vmem:[%s7 + $0x28] sm:$0xf]
    %v599 = vld [vmem:[%s7 + $0x2c] sm:$0xf]
    %v600 = vld [vmem:[%s7 + $0x30] sm:$0xf]
    %v601 = vld [vmem:[%s7 + $0x34] sm:$0xf]
    %v602 = vld [vmem:[%s7 + $0x38] sm:$0xf]
    %v603 = vld [vmem:[%s7 + $0x3c] sm:$0xf]
    %v620 = vunpack.c.l.b16 %v588
    %v621 = vunpack.c.l.b16 %v589
    %v622 = vunpack.c.l.b16 %v590
    %v623 = vunpack.c.l.b16 %v591
    %v624 = vunpack.c.l.b16 %v592
    %v625 = vunpack.c.l.b16 %v593
    %v626 = vunpack.c.l.b16 %v594
    %v627 = vunpack.c.l.b16 %v595
    %v628 = vunpack.c.l.b16 %v596
    %v629 = vunpack.c.l.b16 %v597
    %v630 = vunpack.c.l.b16 %v598
    %v631 = vunpack.c.l.b16 %v599
    %v632 = vunpack.c.l.b16 %v600
    %v633 = vunpack.c.l.b16 %v601
    %v634 = vunpack.c.l.b16 %v602
    %v635 = vunpack.c.l.b16 %v603
    %v636 = vpack.c.b16 %v621, %v620
    %v637 = vpack.c.b16 %v623, %v622
    %v638 = vpack.c.b16 %v625, %v624
    %v639 = vpack.c.b16 %v627, %v626
    %v640 = vpack.c.b16 %v629, %v628
    %v641 = vpack.c.b16 %v631, %v630
    %v642 = vpack.c.b16 %v633, %v632
    %v643 = vpack.c.b16 %v635, %v634
    %652 = vmatprep.subr.bf16.mxu0 0
    %653 = vmatpush1.bf16.msra.mxu0 %v636
    %654 = vmatprep.subr.bf16.mxu0 0
    %655 = vmatpush1.bf16.msra.mxu0 %v637
    %656 = vmatprep.subr.bf16.mxu0 0
    %657 = vmatpush1.bf16.msra.mxu0 %v638
    %658 = vmatprep.subr.bf16.mxu0 0
    %659 = vmatpush1.bf16.msra.mxu0 %v639
    %660 = vmatprep.subr.bf16.mxu0 0
    %661 = vmatpush1.bf16.msra.mxu0 %v640
    %662 = vmatprep.subr.bf16.mxu0 0
    %663 = vmatpush1.bf16.msra.mxu0 %v641
    %664 = vmatprep.subr.bf16.mxu0 0
    %665 = vmatpush1.bf16.msra.mxu0 %v642
    %666 = vmatprep.subr.bf16.mxu0 0
    %667 = vmatpush1.bf16.msra.mxu0 %v643
    %668 = vmatprep.subr.bf16.mxu0 0
    %669 = vmatpush1.bf16.msra.mxu0 0
    %670 = vmatprep.subr.bf16.mxu0 0
    %671 = vmatpush1.bf16.msra.mxu0 0
    %672 = vmatprep.subr.bf16.mxu0 0
    %673 = vmatpush1.bf16.msra.mxu0 0
    %674 = vmatprep.subr.bf16.mxu0 0
    %675 = vmatpush1.bf16.msra.mxu0 0
    %676 = vmatprep.subr.bf16.mxu0 0
    %677 = vmatpush1.bf16.msra.mxu0 0
    %678 = vmatprep.subr.bf16.mxu0 0
    %679 = vmatpush1.bf16.msra.mxu0 0
    %680 = vmatprep.subr.bf16.mxu0 0
    %681 = vmatpush1.bf16.msra.mxu0 0
    %682 = vmatprep.subr.bf16.mxu0 0
    %683 = vmatpush1.bf16.msra.mxu0 0
    %684 = vmatprep.mubr.bf16.mxu0 0
    %685 = vmatmul.mubr.bf16.gmra.mrb[0].mxu0 %v586
    %v686 = vpop.f32.mrb[0].mxu0
    %v687 = vadd.f32 0.0, %v686
    %v688 = vpop.f32.mrb[0].mxu0
    %v689 = vpop.f32.mrb[0].mxu0
    %v690 = vadd.f32 0.0, %v689
    %v691 = vpop.f32.mrb[0].mxu0
    %692 = vmatprep.mubr.bf16.mxu0 0
    %693 = vmatmul.mubr.bf16.gmra.mrb[0].mxu0 %v587
    %v694 = vpop.f32.mrb[0].mxu0
    %v695 = vadd.f32 0.0, %v694
    %v696 = vpop.f32.mrb[0].mxu0
    %v697 = vpop.f32.mrb[0].mxu0
    %v698 = vadd.f32 0.0, %v697
    %v699 = vpop.f32.mrb[0].mxu0
    %700 = vdwg.mxu0
    %v701 = vpack.c.bf16 %v690, %v687
    %v702 = vpack.c.bf16 %v698, %v695
    %v703 = vld [vmem:[%s8] sm:$0x1]
    %v705 = vlaneseq
    %v706 = vshrl.u32 %v705, 7
    %v707 = vsub.s32 0, %v706
    %v708 = vrot.slane %v703, %v707
    %710 = vmatprep.subr.bf16.mxu0 0
    %711 = vmatpush1.bf16.msra.mxu0 %v701
    %712 = vmatprep.subr.bf16.mxu0 0
    %713 = vmatpush1.bf16.msra.mxu0 %v702
    %714 = vmatprep.subr.bf16.mxu0 0
    %715 = vmatpush1.bf16.msra.mxu0 0
    %716 = vmatprep.subr.bf16.mxu0 0
    %717 = vmatpush1.bf16.msra.mxu0 0
    %718 = vmatprep.subr.bf16.mxu0 0
    %719 = vmatpush1.bf16.msra.mxu0 0
    %720 = vmatprep.subr.bf16.mxu0 0
    %721 = vmatpush1.bf16.msra.mxu0 0
    %722 = vmatprep.subr.bf16.mxu0 0
    %723 = vmatpush1.bf16.msra.mxu0 0
    %724 = vmatprep.subr.bf16.mxu0 0
    %725 = vmatpush1.bf16.msra.mxu0 0
    %726 = vmatprep.subr.bf16.mxu0 0
    %727 = vmatpush1.bf16.msra.mxu0 0
    %728 = vmatprep.subr.bf16.mxu0 0
    %729 = vmatpush1.bf16.msra.mxu0 0
    %730 = vmatprep.subr.bf16.mxu0 0
    %731 = vmatpush1.bf16.msra.mxu0 0
    %732 = vmatprep.subr.bf16.mxu0 0
    %733 = vmatpush1.bf16.msra.mxu0 0
    %734 = vmatprep.subr.bf16.mxu0 0
    %735 = vmatpush1.bf16.msra.mxu0 0
    %736 = vmatprep.subr.bf16.mxu0 0
    %737 = vmatpush1.bf16.msra.mxu0 0
    %738 = vmatprep.subr.bf16.mxu0 0
    %739 = vmatpush1.bf16.msra.mxu0 0
    %740 = vmatprep.subr.bf16.mxu0 0
    %741 = vmatpush1.bf16.msra.mxu0 0
    %742 = vmatprep.mubr.bf16.mxu0 0
    %743 = vmatmul.mubr.bf16.gmra.mrb[0].mxu0 %v341
    %v744 = vpop.f32.mrb[0].mxu0
    %v745 = vadd.f32 %v708, %v744
    %v746 = vpop.f32.mrb[0].mxu0
    %v747 = vpop.f32.mrb[0].mxu0
    %v748 = vadd.f32 %v708, %v747
    %v749 = vpop.f32.mrb[0].mxu0
    %750 = vmatprep.mubr.bf16.mxu0 0
    %751 = vmatmul.mubr.bf16.gmra.mrb[0].mxu0 %v344
    %v752 = vpop.f32.mrb[0].mxu0
    %v753 = vadd.f32 %v708, %v752
    %v754 = vpop.f32.mrb[0].mxu0
    %v755 = vpop.f32.mrb[0].mxu0
    %v756 = vadd.f32 %v708, %v755
    %v757 = vpop.f32.mrb[0].mxu0
    %758 = vdwg.mxu0
    %v759 = vmul.f32 %v745, %v87
    %v760 = vmul.f32 %v748, %v92
    %v761 = vmul.f32 %v753, %v97
    %v762 = vmul.f32 %v756, %v102
    %v763 = vadd.f32 %v759, %v760
    %v764 = vadd.f32 %v763, %v761
    %v765 = vadd.f32 %v764, %v762
    %v766 = vrot.slane %v765, 4
    %v767 = vadd.f32 %v765, %v766
    %v768 = vrot.slane %v767, 2
    %v769 = vadd.f32 %v767, %v768
    %v770 = vrot.slane %v769, 1
    %v771 = vadd.f32 %v769, %v770
    %v772 = vmul.f32 %v745, %v745
    %v773 = vmul.f32 %v748, %v748
    %v774 = vmul.f32 %v753, %v753
    %v775 = vmul.f32 %v756, %v756
    %v776 = vmul.f32 %v772, %v87
    %v777 = vmul.f32 %v773, %v92
    %v778 = vmul.f32 %v774, %v97
    %v779 = vmul.f32 %v775, %v102
    %v780 = vadd.f32 %v776, %v777
    %v781 = vadd.f32 %v780, %v778
    %v782 = vadd.f32 %v781, %v779
    %v783 = vrot.slane %v782, 4
    %v784 = vadd.f32 %v782, %v783
    %v785 = vrot.slane %v784, 2
    %v786 = vadd.f32 %v784, %v785
    %v787 = vrot.slane %v786, 1
    %v788 = vadd.f32 %v786, %v787
    %v789 = vmul.f32 %v771, %v771
    %v790 = vsub.f32 %v788, %v789
    %v791 = vmax.f32 %v790, 0.0
    %v792 = vld [vmem:[%s9] sm:$0x1]
    %v793 = vadd.f32 %v791, 1e-05
    %v794 = vrsqrt.pop %v793
    %v795 = vmul.f32 %v792, %v794
    %v796 = vld [vmem:[%s10] sm:$0x1]
    %v797 = vmul.f32 %v771, %v795
    %v798 = vsub.f32 %v796, %v797
    %v800 = vlaneseq
    %v801 = vshrl.u32 %v800, 7
    %v802 = vsub.s32 0, %v801
    %v803 = vrot.slane %v795, %v802
    %v805 = vmul.f32 %v745, %v803
    %v806 = vmul.f32 %v748, %v803
    %v807 = vmul.f32 %v753, %v803
    %v808 = vmul.f32 %v756, %v803
    %v810 = vlaneseq
    %v811 = vshrl.u32 %v810, 7
    %v812 = vsub.s32 0, %v811
    %v813 = vrot.slane %v798, %v812
    %v815 = vadd.f32 %v805, %v813
    %v816 = vadd.f32 %v806, %v813
    %v817 = vadd.f32 %v807, %v813
    %v818 = vadd.f32 %v808, %v813
    %v819 = vmax.f32 %v815, 0.0
    %v820 = vmax.f32 %v816, 0.0
    %v821 = vmax.f32 %v817, 0.0
    %v822 = vmax.f32 %v818, 0.0
    %v823 = vmul.f32 %v819, %v462
    %v824 = vmul.f32 %v820, %v467
    %v825 = vmul.f32 %v821, %v472
    %v826 = vmul.f32 %v822, %v477
    %v827 = vmul.f32 %v823, %v87
    %v828 = vmul.f32 %v824, %v92
    %v829 = vmul.f32 %v825, %v97
    %v830 = vmul.f32 %v826, %v102
    %v831 = vadd.f32 %v827, %v828
    %v832 = vadd.f32 %v831, %v829
    %v833 = vadd.f32 %v832, %v830
    %v834 = vrot.slane %v833, 4
    %v835 = vadd.f32 %v833, %v834
    %v836 = vrot.slane %v835, 2
    %v837 = vadd.f32 %v835, %v836
    %v838 = vrot.slane %v837, 1
    %v839 = vadd.f32 %v837, %v838
    %840 = vst [vmem:[%s18 + $0x2] sm:$0x1] %v839
    %v841 = vld [vmem:[%s15] sm:$0xff]
    %v842 = vld [vmem:[%s15 + $0x8] sm:$0xff]
    %v843 = vld [vmem:[%s15 + $0x10] sm:$0xff]
    %v844 = vld [vmem:[%s15 + $0x18] sm:$0xff]
    %v845 = vld [vmem:[%s15 + $0x20] sm:$0xff]
    %v846 = vld [vmem:[%s15 + $0x28] sm:$0xff]
    %v847 = vld [vmem:[%s15 + $0x30] sm:$0xff]
    %v848 = vld [vmem:[%s15 + $0x38] sm:$0xff]
    %v849 = vld [vmem:[%s15 + $0x40] sm:$0xff]
    %v850 = vld [vmem:[%s15 + $0x48] sm:$0xff]
    %v851 = vld [vmem:[%s15 + $0x50] sm:$0xff]
    %v852 = vld [vmem:[%s15 + $0x58] sm:$0xff]
    %v853 = vld [vmem:[%s15 + $0x60] sm:$0xff]
    %v854 = vld [vmem:[%s15 + $0x68] sm:$0xff]
    %v855 = vld [vmem:[%s15 + $0x70] sm:$0xff]
    %v856 = vld [vmem:[%s15 + $0x78] sm:$0xff]
    %v857 = vld [vmem:[%s16] sm:$0x1]
    %858 = vmatprep.subr.mxu0 0.0
    %859 = vmatpush1.msra.mxu0 %v841
    %860 = vmatprep.subr.mxu0 0.0
    %861 = vmatpush1.msra.mxu0 %v842
    %862 = vmatprep.subr.mxu0 0.0
    %863 = vmatpush1.msra.mxu0 %v843
    %864 = vmatprep.subr.mxu0 0.0
    %865 = vmatpush1.msra.mxu0 %v844
    %866 = vmatprep.subr.mxu0 0.0
    %867 = vmatpush1.msra.mxu0 %v845
    %868 = vmatprep.subr.mxu0 0.0
    %869 = vmatpush1.msra.mxu0 %v846
    %870 = vmatprep.subr.mxu0 0.0
    %871 = vmatpush1.msra.mxu0 %v847
    %872 = vmatprep.subr.mxu0 0.0
    %873 = vmatpush1.msra.mxu0 %v848
    %874 = vmatprep.subr.mxu0 0.0
    %875 = vmatpush1.msra.mxu0 %v849
    %876 = vmatprep.subr.mxu0 0.0
    %877 = vmatpush1.msra.mxu0 %v850
    %878 = vmatprep.subr.mxu0 0.0
    %879 = vmatpush1.msra.mxu0 %v851
    %880 = vmatprep.subr.mxu0 0.0
    %881 = vmatpush1.msra.mxu0 %v852
    %882 = vmatprep.subr.mxu0 0.0
    %883 = vmatpush1.msra.mxu0 %v853
    %884 = vmatprep.subr.mxu0 0.0
    %885 = vmatpush1.msra.mxu0 %v854
    %886 = vmatprep.subr.mxu0 0.0
    %887 = vmatpush1.msra.mxu0 %v855
    %888 = vmatprep.subr.mxu0 0.0
    %889 = vmatpush1.msra.mxu0 %v856
    %890 = vmatprep.subr.mxu0 0.0
    %891 = vmatpush1.msra.mxu0 0.0
    %892 = vmatprep.subr.mxu0 0.0
    %893 = vmatpush1.msra.mxu0 0.0
    %894 = vmatprep.subr.mxu0 0.0
    %895 = vmatpush1.msra.mxu0 0.0
    %896 = vmatprep.subr.mxu0 0.0
    %897 = vmatpush1.msra.mxu0 0.0
    %898 = vmatprep.subr.mxu0 0.0
    %899 = vmatpush1.msra.mxu0 0.0
    %900 = vmatprep.subr.mxu0 0.0
    %901 = vmatpush1.msra.mxu0 0.0
    %902 = vmatprep.subr.mxu0 0.0
    %903 = vmatpush1.msra.mxu0 0.0
    %904 = vmatprep.subr.mxu0 0.0
    %905 = vmatpush1.msra.mxu0 0.0
    %906 = vmatprep.subr.mxu0 0.0
    %907 = vmatpush1.msra.mxu0 0.0
    %908 = vmatprep.subr.mxu0 0.0
    %909 = vmatpush1.msra.mxu0 0.0
    %910 = vmatprep.subr.mxu0 0.0
    %911 = vmatpush1.msra.mxu0 0.0
    %912 = vmatprep.subr.mxu0 0.0
    %913 = vmatpush1.msra.mxu0 0.0
    %914 = vmatprep.subr.mxu0 0.0
    %915 = vmatpush1.msra.mxu0 0.0
    %916 = vmatprep.subr.mxu0 0.0
    %917 = vmatpush1.msra.mxu0 0.0
    %918 = vmatprep.subr.mxu0 0.0
    %919 = vmatpush1.msra.mxu0 0.0
    %920 = vmatprep.subr.mxu0 0.0
    %921 = vmatpush1.msra.mxu0 0.0
    %922 = vmatprep.mubr.f32.mxu0 0.0
    %923 = vmatmul.mubr.f32.gmra.mrb[0].mxu0 %v839
    %v924 = vpop.f32.mrb[0].mxu0
    %v925 = vadd.f32 0.0, %v924
    %v926 = vpop.f32.mrb[0].mxu0
    %927 = vdwg.mxu0
    %v928 = vadd.f32 %v585, %v925
    %v929 = vadd.f32 %v928, %v857
    %930 = vst [vmem:[#allocation2] sm:$0x1] %v929
    // Predicated region
    $region70: #{gcn_forward.1} parent=1 // pred_check
      _
    $region71: #{gcn_forward.1} parent=1 // pred_check_branch
      %932 = sbr.rel (0) target = $region73
    $region72: #{gcn_forward.1} parent=1 // pred_region
      %s934 = ssub.s32 16, 16
      %935 = vsyncadd [#allocation3], %s934
      %s937 = sshll.u32 [#allocation2], 4
      %s938 = int_to_ptr.vmem [resolvable:$true] %s937
      %940 = dma.vmem_to_hbm [thread:$0]  %s938, 16, %s17, [#allocation3]
    $region73: #{gcn_forward.1} parent=1 // pred_fallthru
      _
    // Predicated region
    $region74: #{gcn_forward.1} parent=1 // pred_check
      _
    $region75: #{gcn_forward.1} parent=1 // pred_check_branch
      %942 = sbr.rel (0) target = $region77
    $region76: #{gcn_forward.1} parent=1 // pred_region
      _
    $region77: #{gcn_forward.1} parent=1 // pred_fallthru
      _
    // Predicated region
    $region78: #{gcn_forward.1} parent=1 // pred_check
      _
    $region79: #{gcn_forward.1} parent=1 // pred_check_branch
      %944 = sbr.rel (0) target = $region81
    $region80: #{gcn_forward.1} parent=1 // pred_region
      %945 = dma.done [#allocation3], 16
    $region81: #{gcn_forward.1} parent=1 // pred_fallthru
      _
    // Predicated region
    $region82: #{gcn_forward.1} parent=1 // pred_check
      _
    $region83: #{gcn_forward.1} parent=1 // pred_check_branch
      %947 = sbr.rel (0) target = $region85
    $region84: #{gcn_forward.1} parent=1 // pred_region
      _
    $region85: #{gcn_forward.1} parent=1 // pred_fallthru
      _
    %948 = vsyncpa [#allocation3], 1

</llo_original>
